<compile_context>
chip_gen: v5e
topology: v5e:2x2
jax: 0.10.0
libtpu: 0.0.40
codegen_flags: <defaults>
</compile_context>

<pallas_src>
import jax
import jax.numpy as jnp
from jax.experimental import pallas as pl
from jax.experimental.pallas import tpu as pltpu

EPS = 1e-5            # nn.BatchNorm1d default eps
NEG_SLOPE = 0.01      # nn.LeakyReLU default negative_slope


def _leaky_relu(x):
    # max(x, a*x) == LeakyReLU(x) for 0 <= a <= 1
    return jnp.maximum(x, NEG_SLOPE * x)


def dense_resnet_kernel(x_ref, w1_ref, g1_ref, be1_ref,
                        w2_ref, g2_ref, be2_ref,
                        o_ref, act_ref):
    l = pl.program_id(0)

    # Load the network input once; afterwards the activation lives in VMEM scratch.
    @pl.when(l == 0)
    def _():
        act_ref[...] = x_ref[...]

    x = act_ref[...]                                           # (N, Fp) f32

    # ---- lin1 (bias omitted: cancelled by the batch-mean subtraction below) ----
    h = jnp.dot(x.astype(jnp.bfloat16), w1_ref[...],
                preferred_element_type=jnp.float32)            # bf16 MXU, f32 acc

    # ---- bn1: training-mode batch stats, folded per-feature scale --------------
    m1 = jnp.mean(h, axis=0, keepdims=True)                    # (1, Fp)
    c1 = h - m1
    v1 = jnp.mean(c1 * c1, axis=0, keepdims=True)
    h = c1 * (g1_ref[...] * jax.lax.rsqrt(v1 + EPS)) + be1_ref[...]

    # ---- leaky relu (dropout=0.0 -> no dropout branch) -------------------------
    h = _leaky_relu(h)

    # ---- lin2 -------------------------------------------------------------------
    h2 = jnp.dot(h.astype(jnp.bfloat16), w2_ref[...],
                 preferred_element_type=jnp.float32)

    # ---- bn2 ----------------------------------------------------------------------
    m2 = jnp.mean(h2, axis=0, keepdims=True)
    c2 = h2 - m2
    v2 = jnp.mean(c2 * c2, axis=0, keepdims=True)
    h2 = c2 * (g2_ref[...] * jax.lax.rsqrt(v2 + EPS)) + be2_ref[...]

    # ---- identity residual + leaky relu -----------------------------------------
    out = _leaky_relu(h2 + x)
    act_ref[...] = out

    @pl.when(l == pl.num_programs(0) - 1)
    def _():
        o_ref[...] = out.astype(o_ref.dtype)


def dense_resnet(x, stacked):
    """x: (N, F) float32.
    stacked: dict of per-layer params stacked along a leading L axis:
      w1, w2 : (L, F, F)   (Linear weights pre-transposed: in_features x out_features)
      g1, be1, g2, be2 : (L, 1, F)   (BatchNorm weight / bias)
    Linear biases are intentionally not passed (cancelled by training-mode BN).
    """
    N, F = x.shape
    L = stacked["w1"].shape[0]
    assert stacked["w1"].shape[1] == F, "identity residual requires equal dims"

    # Lane-dense padding of the feature dim to a multiple of 128.
    Fp = 128 * pl.cdiv(F, 128)
    pf = Fp - F
    xp = jnp.pad(x, ((0, 0), (0, pf))).astype(jnp.float32)
    pad_w = lambda w: jnp.pad(w, ((0, 0), (0, pf), (0, pf))).astype(jnp.bfloat16)
    pad_v = lambda v: jnp.pad(v, ((0, 0), (0, 0), (0, pf))).astype(jnp.float32)

    w1 = pad_w(stacked["w1"]); w2 = pad_w(stacked["w2"])
    g1 = pad_v(stacked["g1"]); be1 = pad_v(stacked["be1"])
    g2 = pad_v(stacked["g2"]); be2 = pad_v(stacked["be2"])

    act_spec = pl.BlockSpec((N, Fp), lambda l: (0, 0))          # resident across L
    w_spec = pl.BlockSpec((None, Fp, Fp), lambda l: (l, 0, 0))  # per-layer weight
    v_spec = pl.BlockSpec((None, 1, Fp), lambda l: (l, 0, 0))   # per-layer gamma/beta

    out = pl.pallas_call(
        dense_resnet_kernel,
        out_shape=jax.ShapeDtypeStruct((N, Fp), x.dtype),
        grid_spec=pltpu.PrefetchScalarGridSpec(
            num_scalar_prefetch=0,
            grid=(L,),
            in_specs=[act_spec, w_spec, v_spec, v_spec, w_spec, v_spec, v_spec],
            out_specs=act_spec,
            scratch_shapes=[pltpu.VMEM((N, Fp), jnp.float32)],
        ),
        compiler_params=pltpu.CompilerParams(
            dimension_semantics=("arbitrary",)),   # layer axis is a dependency chain
    )(xp, w1, g1, be1, w2, g2, be2)

    return out[:, :F]


def dense_resnet_ref(x, layers):
    """Pure-JAX reference mirroring the PyTorch module (training-mode BN, biases
    included — they cancel). Matmuls use bf16 operands to mirror the kernel's MXU
    inputs."""
    out = x
    for p in layers:
        identity = out
        h = jnp.dot(out.astype(jnp.bfloat16), p["w1"].astype(jnp.bfloat16),
                    preferred_element_type=jnp.float32) + p["b1"]
        m, v = jnp.mean(h, 0, keepdims=True), jnp.var(h, 0, keepdims=True)
        h = (h - m) * jax.lax.rsqrt(v + EPS) * p["g1"] + p["be1"]
        h = jnp.where(h >= 0, h, NEG_SLOPE * h)
        h2 = jnp.dot(h.astype(jnp.bfloat16), p["w2"].astype(jnp.bfloat16),
                     preferred_element_type=jnp.float32) + p["b2"]
        m2, v2 = jnp.mean(h2, 0, keepdims=True), jnp.var(h2, 0, keepdims=True)
        h2 = (h2 - m2) * jax.lax.rsqrt(v2 + EPS) * p["g2"] + p["be2"]
        out = h2 + identity
        out = jnp.where(out >= 0, out, NEG_SLOPE * out)
    return out


if __name__ == "__main__":
    key = jax.random.PRNGKey(0)
    N, F = 8, 32
    blocks_dims = [F, F, F, F, F]       # input_dim == blocks_dims[0], 4 BasicBlocks
    L = len(blocks_dims) - 1

    keys = jax.random.split(key, 1 + 8 * L)
    x = jax.random.normal(keys[0], (N, F), dtype=jnp.float32)

    layers = []
    for i in range(L):
        k = keys[1 + 8 * i: 1 + 8 * (i + 1)]
        layers.append({
            "w1": 0.1 * jax.random.normal(k[0], (F, F), jnp.float32),   # lin1.weight.T
            "b1": 0.1 * jax.random.normal(k[1], (1, F), jnp.float32),   # lin1.bias
            "g1": 1.0 + 0.1 * jax.random.normal(k[2], (1, F), jnp.float32),  # bn1.weight
            "be1": 0.1 * jax.random.normal(k[3], (1, F), jnp.float32),       # bn1.bias
            "w2": 0.1 * jax.random.normal(k[4], (F, F), jnp.float32),   # lin2.weight.T
            "b2": 0.1 * jax.random.normal(k[5], (1, F), jnp.float32),   # lin2.bias
            "g2": 1.0 + 0.1 * jax.random.normal(k[6], (1, F), jnp.float32),  # bn2.weight
            "be2": 0.1 * jax.random.normal(k[7], (1, F), jnp.float32),       # bn2.bias
        })

    stacked = {name: jnp.stack([p[name] for p in layers], axis=0)
               for name in ("w1", "g1", "be1", "w2", "g2", "be2")}

    y = dense_resnet(x, stacked)
    y = jax.block_until_ready(y)

    y_ref = dense_resnet_ref(x, layers)
    assert y.shape == (N, F)
    assert jnp.allclose(y, y_ref, atol=1e-2, rtol=1e-2), (
        "mismatch vs reference: max abs diff = %e"
        % float(jnp.max(jnp.abs(y - y_ref))))

    print("KERNEL_OK")
</pallas_src>

<mosaic_0001>
module attributes {stable_mosaic.version = 11 : i64} {
  func.func @dense_resnet_kernel(%arg0: i32, %arg1: memref<8x128xf32, #tpu.memory_space<vmem>>, %arg2: memref<1x128x128xbf16, #tpu.memory_space<vmem>>, %arg3: memref<1x1x128xf32, #tpu.memory_space<vmem>>, %arg4: memref<1x1x128xf32, #tpu.memory_space<vmem>>, %arg5: memref<1x128x128xbf16, #tpu.memory_space<vmem>>, %arg6: memref<1x1x128xf32, #tpu.memory_space<vmem>>, %arg7: memref<1x1x128xf32, #tpu.memory_space<vmem>>, %arg8: memref<8x128xf32, #tpu.memory_space<vmem>>, %arg9: memref<8x128xf32, #tpu.memory_space<vmem>>) attributes {dimension_semantics = [#tpu.dimension_semantics<arbitrary>], iteration_bounds = array<i64: 4>, scalar_prefetch = 0 : i64, scratch_operands = 1 : i64, tpu.core_type = #tpu.core_type<tc>, window_params = [{pipeline_mode = #tpu.pipeline_mode<synchronous>, transform_indices = @transform_0, window_bounds = array<i64: 8, 128>}, {transform_indices = @transform_1, window_bounds = array<i64: 1, 128, 128>}, {transform_indices = @transform_2, window_bounds = array<i64: 1, 1, 128>}, {transform_indices = @transform_3, window_bounds = array<i64: 1, 1, 128>}, {transform_indices = @transform_4, window_bounds = array<i64: 1, 128, 128>}, {transform_indices = @transform_5, window_bounds = array<i64: 1, 1, 128>}, {transform_indices = @transform_6, window_bounds = array<i64: 1, 1, 128>}, {pipeline_mode = #tpu.pipeline_mode<synchronous>, transform_indices = @transform_7, window_bounds = array<i64: 8, 128>}]} {
    %c0_i32 = arith.constant 0 : i32
    %0 = arith.cmpi eq, %arg0, %c0_i32 : i32
    %1 = arith.extui %0 : i1 to i32
    %c0_i32_0 = arith.constant 0 : i32
    %2 = arith.cmpi ne, %1, %c0_i32_0 : i32
    scf.if %2 {
      %c0_36 = arith.constant 0 : index
      %c0_37 = arith.constant 0 : index
      %69 = vector.load %arg1[%c0_36, %c0_37] : memref<8x128xf32, #tpu.memory_space<vmem>>, vector<8x128xf32>
      %c0_38 = arith.constant 0 : index
      %c0_39 = arith.constant 0 : index
      %70 = vector.load %arg9[%c0_38, %c0_39] : memref<8x128xf32, #tpu.memory_space<vmem>>, vector<8x128xf32>
      tpu.vector_store %arg9[%c0_38, %c0_39], %69 {strides = array<i32>} : memref<8x128xf32, #tpu.memory_space<vmem>>, vector<8x128xf32>,
    } else {
    }
    %c0 = arith.constant 0 : index
    %c0_1 = arith.constant 0 : index
    %3 = vector.load %arg9[%c0, %c0_1] : memref<8x128xf32, #tpu.memory_space<vmem>>, vector<8x128xf32>
    %4 = arith.truncf %3 : vector<8x128xf32> to vector<8x128xbf16>
    %c0_2 = arith.constant 0 : index
    %c0_3 = arith.constant 0 : index
    %c0_4 = arith.constant 0 : index
    %5 = vector.load %arg2[%c0_2, %c0_3, %c0_4] : memref<1x128x128xbf16, #tpu.memory_space<vmem>>, vector<1x128x128xbf16>
    %6 = vector.shape_cast %5 : vector<1x128x128xbf16> to vector<128x128xbf16>
    %cst = arith.constant dense<0.000000e+00> : vector<8x128xf32>
    %7 = tpu.matmul %4, %6, %cst {dimension_numbers = #tpu.dot_dimension_numbers<[1], [0], [0], [1], [0, 0, 1, 1], [], []>} : vector<8x128xbf16>, vector<128x128xbf16>, vector<8x128xf32> -> vector<8x128xf32>
    %cst_5 = arith.constant dense<0.000000e+00> : vector<128xf32>
    %8 = vector.multi_reduction <add>, %7, %cst_5 [0] : vector<8x128xf32> to vector<128xf32>
    %9 = vector.shape_cast %8 : vector<128xf32> to vector<1x128xf32>
    %cst_6 = arith.constant 8.000000e+00 : f32
    %10 = vector.broadcast %cst_6 : f32 to vector<1x128xf32>
    %11 = arith.divf %9, %10 : vector<1x128xf32>
    %12 = vector.broadcast %11 : vector<1x128xf32> to vector<8x128xf32>
    %13 = arith.subf %7, %12 : vector<8x128xf32>
    %14 = arith.mulf %13, %13 : vector<8x128xf32>
    %cst_7 = arith.constant dense<0.000000e+00> : vector<128xf32>
    %15 = vector.multi_reduction <add>, %14, %cst_7 [0] : vector<8x128xf32> to vector<128xf32>
    %16 = vector.shape_cast %15 : vector<128xf32> to vector<1x128xf32>
    %cst_8 = arith.constant 8.000000e+00 : f32
    %17 = vector.broadcast %cst_8 : f32 to vector<1x128xf32>
    %18 = arith.divf %16, %17 : vector<1x128xf32>
    %c0_9 = arith.constant 0 : index
    %c0_10 = arith.constant 0 : index
    %c0_11 = arith.constant 0 : index
    %19 = vector.load %arg3[%c0_9, %c0_10, %c0_11] : memref<1x1x128xf32, #tpu.memory_space<vmem>>, vector<1x1x128xf32>
    %20 = vector.shape_cast %19 : vector<1x1x128xf32> to vector<1x128xf32>
    %cst_12 = arith.constant 9.99999974E-6 : f32
    %21 = vector.broadcast %cst_12 : f32 to vector<1x128xf32>
    %22 = arith.addf %18, %21 : vector<1x128xf32>
    %23 = math.rsqrt %22 : vector<1x128xf32>
    %24 = arith.mulf %20, %23 : vector<1x128xf32>
    %25 = vector.broadcast %24 : vector<1x128xf32> to vector<8x128xf32>
    %26 = arith.mulf %13, %25 : vector<8x128xf32>
    %c0_13 = arith.constant 0 : index
    %c0_14 = arith.constant 0 : index
    %c0_15 = arith.constant 0 : index
    %27 = vector.load %arg4[%c0_13, %c0_14, %c0_15] : memref<1x1x128xf32, #tpu.memory_space<vmem>>, vector<1x1x128xf32>
    %28 = vector.shape_cast %27 : vector<1x1x128xf32> to vector<1x128xf32>
    %29 = vector.broadcast %28 : vector<1x128xf32> to vector<8x128xf32>
    %30 = arith.addf %26, %29 : vector<8x128xf32>
    %cst_16 = arith.constant 0.00999999977 : f32
    %31 = vector.broadcast %cst_16 : f32 to vector<8x128xf32>
    %32 = arith.mulf %31, %30 : vector<8x128xf32>
    %33 = arith.maximumf %30, %32 : vector<8x128xf32>
    %34 = arith.truncf %33 : vector<8x128xf32> to vector<8x128xbf16>
    %c0_17 = arith.constant 0 : index
    %c0_18 = arith.constant 0 : index
    %c0_19 = arith.constant 0 : index
    %35 = vector.load %arg5[%c0_17, %c0_18, %c0_19] : memref<1x128x128xbf16, #tpu.memory_space<vmem>>, vector<1x128x128xbf16>
    %36 = vector.shape_cast %35 : vector<1x128x128xbf16> to vector<128x128xbf16>
    %cst_20 = arith.constant dense<0.000000e+00> : vector<8x128xf32>
    %37 = tpu.matmul %34, %36, %cst_20 {dimension_numbers = #tpu.dot_dimension_numbers<[1], [0], [0], [1], [0, 0, 1, 1], [], []>} : vector<8x128xbf16>, vector<128x128xbf16>, vector<8x128xf32> -> vector<8x128xf32>
    %cst_21 = arith.constant dense<0.000000e+00> : vector<128xf32>
    %38 = vector.multi_reduction <add>, %37, %cst_21 [0] : vector<8x128xf32> to vector<128xf32>
    %39 = vector.shape_cast %38 : vector<128xf32> to vector<1x128xf32>
    %cst_22 = arith.constant 8.000000e+00 : f32
    %40 = vector.broadcast %cst_22 : f32 to vector<1x128xf32>
    %41 = arith.divf %39, %40 : vector<1x128xf32>
    %42 = vector.broadcast %41 : vector<1x128xf32> to vector<8x128xf32>
    %43 = arith.subf %37, %42 : vector<8x128xf32>
    %44 = arith.mulf %43, %43 : vector<8x128xf32>
    %cst_23 = arith.constant dense<0.000000e+00> : vector<128xf32>
    %45 = vector.multi_reduction <add>, %44, %cst_23 [0] : vector<8x128xf32> to vector<128xf32>
    %46 = vector.shape_cast %45 : vector<128xf32> to vector<1x128xf32>
    %cst_24 = arith.constant 8.000000e+00 : f32
    %47 = vector.broadcast %cst_24 : f32 to vector<1x128xf32>
    %48 = arith.divf %46, %47 : vector<1x128xf32>
    %c0_25 = arith.constant 0 : index
    %c0_26 = arith.constant 0 : index
    %c0_27 = arith.constant 0 : index
    %49 = vector.load %arg6[%c0_25, %c0_26, %c0_27] : memref<1x1x128xf32, #tpu.memory_space<vmem>>, vector<1x1x128xf32>
    %50 = vector.shape_cast %49 : vector<1x1x128xf32> to vector<1x128xf32>
    %cst_28 = arith.constant 9.99999974E-6 : f32
    %51 = vector.broadcast %cst_28 : f32 to vector<1x128xf32>
    %52 = arith.addf %48, %51 : vector<1x128xf32>
    %53 = math.rsqrt %52 : vector<1x128xf32>
    %54 = arith.mulf %50, %53 : vector<1x128xf32>
    %55 = vector.broadcast %54 : vector<1x128xf32> to vector<8x128xf32>
    %56 = arith.mulf %43, %55 : vector<8x128xf32>
    %c0_29 = arith.constant 0 : index
    %c0_30 = arith.constant 0 : index
    %c0_31 = arith.constant 0 : index
    %57 = vector.load %arg7[%c0_29, %c0_30, %c0_31] : memref<1x1x128xf32, #tpu.memory_space<vmem>>, vector<1x1x128xf32>
    %58 = vector.shape_cast %57 : vector<1x1x128xf32> to vector<1x128xf32>
    %59 = vector.broadcast %58 : vector<1x128xf32> to vector<8x128xf32>
    %60 = arith.addf %56, %59 : vector<8x128xf32>
    %61 = arith.addf %60, %3 : vector<8x128xf32>
    %cst_32 = arith.constant 0.00999999977 : f32
    %62 = vector.broadcast %cst_32 : f32 to vector<8x128xf32>
    %63 = arith.mulf %62, %61 : vector<8x128xf32>
    %64 = arith.maximumf %61, %63 : vector<8x128xf32>
    %c0_33 = arith.constant 0 : index
    %c0_34 = arith.constant 0 : index
    %65 = vector.load %arg9[%c0_33, %c0_34] : memref<8x128xf32, #tpu.memory_space<vmem>>, vector<8x128xf32>
    tpu.vector_store %arg9[%c0_33, %c0_34], %64 {strides = array<i32>} : memref<8x128xf32, #tpu.memory_space<vmem>>, vector<8x128xf32>,
    %c3_i32 = arith.constant 3 : i32
    %66 = arith.cmpi eq, %arg0, %c3_i32 : i32
    %67 = arith.extui %66 : i1 to i32
    %c0_i32_35 = arith.constant 0 : i32
    %68 = arith.cmpi ne, %67, %c0_i32_35 : i32
    scf.if %68 {
      %c0_36 = arith.constant 0 : index
      %c0_37 = arith.constant 0 : index
      %69 = vector.load %arg8[%c0_36, %c0_37] : memref<8x128xf32, #tpu.memory_space<vmem>>, vector<8x128xf32>
      tpu.vector_store %arg8[%c0_36, %c0_37], %64 {strides = array<i32>} : memref<8x128xf32, #tpu.memory_space<vmem>>, vector<8x128xf32>,
    } else {
    }
    return
  }
  func.func @transform_0(%arg0: i32) -> (i32, i32) {
    %c0_i32 = arith.constant 0 : i32
    %c0_i32_0 = arith.constant 0 : i32
    %c0_i32_1 = arith.constant 0 : i32
    return %c0_i32, %c0_i32_0 : i32, i32
  }
  func.func @transform_1(%arg0: i32) -> (i32, i32, i32) {
    %c0_i32 = arith.constant 0 : i32
    %c0_i32_0 = arith.constant 0 : i32
    %c0_i32_1 = arith.constant 0 : i32
    return %arg0, %c0_i32, %c0_i32_0 : i32, i32, i32
  }
  func.func @transform_2(%arg0: i32) -> (i32, i32, i32) {
    %c0_i32 = arith.constant 0 : i32
    %c0_i32_0 = arith.constant 0 : i32
    %c0_i32_1 = arith.constant 0 : i32
    return %arg0, %c0_i32, %c0_i32_0 : i32, i32, i32
  }
  func.func @transform_3(%arg0: i32) -> (i32, i32, i32) {
    %c0_i32 = arith.constant 0 : i32
    %c0_i32_0 = arith.constant 0 : i32
    %c0_i32_1 = arith.constant 0 : i32
    return %arg0, %c0_i32, %c0_i32_0 : i32, i32, i32
  }
  func.func @transform_4(%arg0: i32) -> (i32, i32, i32) {
    %c0_i32 = arith.constant 0 : i32
    %c0_i32_0 = arith.constant 0 : i32
    %c0_i32_1 = arith.constant 0 : i32
    return %arg0, %c0_i32, %c0_i32_0 : i32, i32, i32
  }
  func.func @transform_5(%arg0: i32) -> (i32, i32, i32) {
    %c0_i32 = arith.constant 0 : i32
    %c0_i32_0 = arith.constant 0 : i32
    %c0_i32_1 = arith.constant 0 : i32
    return %arg0, %c0_i32, %c0_i32_0 : i32, i32, i32
  }
  func.func @transform_6(%arg0: i32) -> (i32, i32, i32) {
    %c0_i32 = arith.constant 0 : i32
    %c0_i32_0 = arith.constant 0 : i32
    %c0_i32_1 = arith.constant 0 : i32
    return %arg0, %c0_i32, %c0_i32_0 : i32, i32, i32
  }
  func.func @transform_7(%arg0: i32) -> (i32, i32) {
    %c0_i32 = arith.constant 0 : i32
    %c0_i32_0 = arith.constant 0 : i32
    %c0_i32_1 = arith.constant 0 : i32
    return %c0_i32, %c0_i32_0 : i32, i32
  }
}

</mosaic_0001>

<llo_original>
// kernel: tpu_custom_call.1
$region0: #{tpu_custom_call.1}
  #allocation0 [shape = 'u32[]', space=smem, size = 0x4, offset = 0x4, fixed_abs, tag = 'smem constant byte address 0x4 - core index']
  #allocation1 [shape = 'u32[72,128]{1,0:T(1,128)}', space=vmem, size = 0x9000, scoped, tag = 'internal scratch']
  #allocation2 [shape = 'f32[8,128]{1,0:T(8,128)}', space=vmem, size = 0x1000, scoped, tag = 'scratch operand']
  %s0 = inlined_call_operand.hbm [shape: f32[8,128], index: 0, kind: input, shape index: {}]
  %s1 = inlined_call_operand.hbm [shape: bf16[4,128,128], index: 1, kind: input, shape index: {}]
  %s2 = inlined_call_operand.hbm [shape: f32[4,1,128], index: 2, kind: input, shape index: {}]
  %s3 = inlined_call_operand.hbm [shape: f32[4,1,128], index: 3, kind: input, shape index: {}]
  %s4 = inlined_call_operand.hbm [shape: bf16[4,128,128], index: 4, kind: input, shape index: {}]
  %s5 = inlined_call_operand.vmem [shape: f32[4,1,128], index: 5, kind: input, shape index: {}]
  %s6 = inlined_call_operand.hbm [shape: f32[4,1,128], index: 6, kind: input, shape index: {}]
  %s7 = inlined_call_operand.hbm [shape: f32[8,128], index: 7, kind: output, shape index: {}]
  %s8 = sld [smem:[#allocation0]]
  $region93: #{tpu_custom_call.1} parent=0
    _
  %s10 = ssub.s32 1, %s8
  %s11 = scalar_select 0, %s10, %s8
  $region1: #{tpu_custom_call.1} parent=0
    #allocation3 [shape = 'u8[4096]{0}', space=vmem, size = 0x1000, scoped, tag = 'input window, operand 0, single buffered']
    #allocation4 [shape = 's32[2]{0}', space=sflag, size = 0x8, scoped, tag = 'scoped memory for tpu_custom_call.1']
    #allocation5 [shape = 's32[2]{0}', space=sflag, size = 0x8, scoped, tag = 'scoped memory for tpu_custom_call.1']
    #allocation6 [shape = 'u8[65536]{0}', space=vmem, size = 0x10000, scoped, tag = 'input window, operand 1']
    #allocation7 [shape = 's32[2]{0}', space=sflag, size = 0x8, scoped, tag = 'scoped memory for tpu_custom_call.1']
    #allocation8 [shape = 'u8[1024]{0}', space=vmem, size = 0x400, scoped, tag = 'input window, operand 2']
    #allocation9 [shape = 'u8[1024]{0}', space=vmem, size = 0x400, scoped, tag = 'input window, operand 3']
    #allocation10 [shape = 's32[2]{0}', space=sflag, size = 0x8, scoped, tag = 'scoped memory for tpu_custom_call.1']
    #allocation11 [shape = 'u8[65536]{0}', space=vmem, size = 0x10000, scoped, tag = 'input window, operand 4']
    #allocation12 [shape = 'u8[1024]{0}', space=vmem, size = 0x400, scoped, tag = 'input window, operand 6']
    #allocation13 [shape = 's32[2]{0}', space=sflag, size = 0x8, scoped, tag = 'scoped memory for tpu_custom_call.1']
    #allocation14 [shape = 'u8[4096]{0}', space=vmem, size = 0x1000, scoped, tag = 'output window, operand 0, single buffered']
    %12 = vsyncpa [#allocation4], 0
    %13 = vsyncpa [#allocation7], 0
    %s14 = scalar_lea.sflag [#allocation7], 1
    %15 = vsyncpa %s14, 0
    %16 = vsyncpa [#allocation10], 0
    %s17 = scalar_lea.sflag [#allocation10], 1
    %18 = vsyncpa %s17, 0
    %19 = vsyncpa [#allocation13], 0
    %s20 = scalar_lea.sflag [#allocation13], 1
    %21 = vsyncpa %s20, 0
    %22 = vsyncpa [#allocation5], 0
    loop: start=0, step=1, limit=6
    $region2: #{tpu_custom_call.1} parent=1 // loop_pre_header
      _
    $region3: #{tpu_custom_call.1} parent=1 // loop_header
      %s24 = sphi 0, %s28
      %p25 = scmp.ge.s32.totalorder %s24, 6
      %s32 = sphi 0, %s32
      %s34 = sphi 0, %s32
      %s35 = sphi 0, %s34
      %s49 = sphi 0, %s35
      %s55 = sphi 0, %s57
      %s58 = sphi 0, %s55
      %s59 = sphi 0, %s58
      %s75 = sphi 0, %s59
      %s81 = sphi 0, %s83
      %s84 = sphi 0, %s81
      %s85 = sphi 0, %s84
      %s101 = sphi 0, %s85
      %s107 = sphi 0, %s109
      %s110 = sphi 0, %s107
      %s111 = sphi 0, %s110
      %s127 = sphi 0, %s111
      %s133 = sphi 0, %s135
      %s136 = sphi 0, %s133
      %s137 = sphi 0, %s136
      %s153 = sphi 0, %s137
      %s159 = sphi 0, %s161
      %s162 = sphi 0, %s159
      %s163 = sphi 0, %s162
      %s179 = sphi 0, %s163
      %s185 = sphi 0, %s187
      %s188 = sphi 0, %s185
      %s189 = sphi 0, %s188
      %s205 = sphi 0, %s189
      %s209 = sphi 0, %s209
      %s211 = sphi 0, %s209
      %s212 = sphi 0, %s211
      %s226 = sphi 0, %s212
    $region4: #{tpu_custom_call.1} parent=1 // loop_header_branch
      %27 = sbr.rel (%p25) target = $region8
    $region5: #{tpu_custom_call.1} parent=1 // loop_body
      %s29 = ssub.s32 %s24, 1
      %s30 = ssub.s32 %s24, 2
      %s31 = sadd.s32 %s24, 1
      %s33 = sadd.s32 %s32, 1
      %p36 = scmp.eq.s32.totalorder %s24, 3
      %p37 = scmp.ne.s32.totalorder %s32, %s34
      %p38 = scmp.eq.s32.totalorder %s24, 0
      %p39 = por %p37, %p38
      %p40 = scmp.ne.s32.totalorder %s32, %s34
      %p41 = scmp.eq.s32.totalorder %s29, 3
      %p42 = por %p40, %p41
      %p43 = scmp.ne.s32.totalorder %s34, %s35
      %p44 = scmp.eq.s32.totalorder %s29, 0
      %p45 = por %p43, %p44
      %p46 = scmp.ne.s32.totalorder %s34, %s35
      %p47 = scmp.eq.s32.totalorder %s30, 3
      %p48 = por %p46, %p47
      %p50 = scmp.ne.s32.totalorder %s35, %s49
      %p51 = scmp.eq.s32.totalorder %s30, 0
      %p52 = por %p50, %p51
      %s53 = ssub.s32 %s24, %s31
      %p54 = scmp.eq.s32.totalorder %s53, 0
      %s56 = sadd.s32 %s55, 1
      %s57 = scalar_select %p54, %s55, %s56
      %p60 = pneg %p54
      %p61 = scmp.eq.s32.totalorder %s24, 3
      %p62 = por %p60, %p61
      %p63 = scmp.ne.s32.totalorder %s55, %s58
      %p64 = scmp.eq.s32.totalorder %s24, 0
      %p65 = por %p63, %p64
      %p66 = scmp.ne.s32.totalorder %s55, %s58
      %p67 = scmp.eq.s32.totalorder %s29, 3
      %p68 = por %p66, %p67
      %p69 = scmp.ne.s32.totalorder %s58, %s59
      %p70 = scmp.eq.s32.totalorder %s29, 0
      %p71 = por %p69, %p70
      %p72 = scmp.ne.s32.totalorder %s58, %s59
      %p73 = scmp.eq.s32.totalorder %s30, 3
      %p74 = por %p72, %p73
      %p76 = scmp.ne.s32.totalorder %s59, %s75
      %p77 = scmp.eq.s32.totalorder %s30, 0
      %p78 = por %p76, %p77
      %s79 = ssub.s32 %s24, %s31
      %p80 = scmp.eq.s32.totalorder %s79, 0
      %s82 = sadd.s32 %s81, 1
      %s83 = scalar_select %p80, %s81, %s82
      %p86 = pneg %p80
      %p87 = scmp.eq.s32.totalorder %s24, 3
      %p88 = por %p86, %p87
      %p89 = scmp.ne.s32.totalorder %s81, %s84
      %p90 = scmp.eq.s32.totalorder %s24, 0
      %p91 = por %p89, %p90
      %p92 = scmp.ne.s32.totalorder %s81, %s84
      %p93 = scmp.eq.s32.totalorder %s29, 3
      %p94 = por %p92, %p93
      %p95 = scmp.ne.s32.totalorder %s84, %s85
      %p96 = scmp.eq.s32.totalorder %s29, 0
      %p97 = por %p95, %p96
      %p98 = scmp.ne.s32.totalorder %s84, %s85
      %p99 = scmp.eq.s32.totalorder %s30, 3
      %p100 = por %p98, %p99
      %p102 = scmp.ne.s32.totalorder %s85, %s101
      %p103 = scmp.eq.s32.totalorder %s30, 0
      %p104 = por %p102, %p103
      %s105 = ssub.s32 %s24, %s31
      %p106 = scmp.eq.s32.totalorder %s105, 0
      %s108 = sadd.s32 %s107, 1
      %s109 = scalar_select %p106, %s107, %s108
      %p112 = pneg %p106
      %p113 = scmp.eq.s32.totalorder %s24, 3
      %p114 = por %p112, %p113
      %p115 = scmp.ne.s32.totalorder %s107, %s110
      %p116 = scmp.eq.s32.totalorder %s24, 0
      %p117 = por %p115, %p116
      %p118 = scmp.ne.s32.totalorder %s107, %s110
      %p119 = scmp.eq.s32.totalorder %s29, 3
      %p120 = por %p118, %p119
      %p121 = scmp.ne.s32.totalorder %s110, %s111
      %p122 = scmp.eq.s32.totalorder %s29, 0
      %p123 = por %p121, %p122
      %p124 = scmp.ne.s32.totalorder %s110, %s111
      %p125 = scmp.eq.s32.totalorder %s30, 3
      %p126 = por %p124, %p125
      %p128 = scmp.ne.s32.totalorder %s111, %s127
      %p129 = scmp.eq.s32.totalorder %s30, 0
      %p130 = por %p128, %p129
      %s131 = ssub.s32 %s24, %s31
      %p132 = scmp.eq.s32.totalorder %s131, 0
      %s134 = sadd.s32 %s133, 1
      %s135 = scalar_select %p132, %s133, %s134
      %p138 = pneg %p132
      %p139 = scmp.eq.s32.totalorder %s24, 3
      %p140 = por %p138, %p139
      %p141 = scmp.ne.s32.totalorder %s133, %s136
      %p142 = scmp.eq.s32.totalorder %s24, 0
      %p143 = por %p141, %p142
      %p144 = scmp.ne.s32.totalorder %s133, %s136
      %p145 = scmp.eq.s32.totalorder %s29, 3
      %p146 = por %p144, %p145
      %p147 = scmp.ne.s32.totalorder %s136, %s137
      %p148 = scmp.eq.s32.totalorder %s29, 0
      %p149 = por %p147, %p148
      %p150 = scmp.ne.s32.totalorder %s136, %s137
      %p151 = scmp.eq.s32.totalorder %s30, 3
      %p152 = por %p150, %p151
      %p154 = scmp.ne.s32.totalorder %s137, %s153
      %p155 = scmp.eq.s32.totalorder %s30, 0
      %p156 = por %p154, %p155
      %s157 = ssub.s32 %s24, %s31
      %p158 = scmp.eq.s32.totalorder %s157, 0
      %s160 = sadd.s32 %s159, 1
      %s161 = scalar_select %p158, %s159, %s160
      %p164 = pneg %p158
      %p165 = scmp.eq.s32.totalorder %s24, 3
      %p166 = por %p164, %p165
      %p167 = scmp.ne.s32.totalorder %s159, %s162
      %p168 = scmp.eq.s32.totalorder %s24, 0
      %p169 = por %p167, %p168
      %p170 = scmp.ne.s32.totalorder %s159, %s162
      %p171 = scmp.eq.s32.totalorder %s29, 3
      %p172 = por %p170, %p171
      %p173 = scmp.ne.s32.totalorder %s162, %s163
      %p174 = scmp.eq.s32.totalorder %s29, 0
      %p175 = por %p173, %p174
      %p176 = scmp.ne.s32.totalorder %s162, %s163
      %p177 = scmp.eq.s32.totalorder %s30, 3
      %p178 = por %p176, %p177
      %p180 = scmp.ne.s32.totalorder %s163, %s179
      %p181 = scmp.eq.s32.totalorder %s30, 0
      %p182 = por %p180, %p181
      %s183 = ssub.s32 %s24, %s31
      %p184 = scmp.eq.s32.totalorder %s183, 0
      %s186 = sadd.s32 %s185, 1
      %s187 = scalar_select %p184, %s185, %s186
      %p190 = pneg %p184
      %p191 = scmp.eq.s32.totalorder %s24, 3
      %p192 = por %p190, %p191
      %p193 = scmp.ne.s32.totalorder %s185, %s188
      %p194 = scmp.eq.s32.totalorder %s24, 0
      %p195 = por %p193, %p194
      %p196 = scmp.ne.s32.totalorder %s185, %s188
      %p197 = scmp.eq.s32.totalorder %s29, 3
      %p198 = por %p196, %p197
      %p199 = scmp.ne.s32.totalorder %s188, %s189
      %p200 = scmp.eq.s32.totalorder %s29, 0
      %p201 = por %p199, %p200
      %p202 = scmp.ne.s32.totalorder %s188, %s189
      %p203 = scmp.eq.s32.totalorder %s30, 3
      %p204 = por %p202, %p203
      %p206 = scmp.ne.s32.totalorder %s189, %s205
      %p207 = scmp.eq.s32.totalorder %s30, 0
      %p208 = por %p206, %p207
      %s210 = sadd.s32 %s209, 1
      %p213 = scmp.eq.s32.totalorder %s24, 3
      %p214 = scmp.ne.s32.totalorder %s209, %s211
      %p215 = scmp.eq.s32.totalorder %s24, 0
      %p216 = por %p214, %p215
      %p217 = scmp.ne.s32.totalorder %s209, %s211
      %p218 = scmp.eq.s32.totalorder %s29, 3
      %p219 = por %p217, %p218
      %p220 = scmp.ne.s32.totalorder %s211, %s212
      %p221 = scmp.eq.s32.totalorder %s29, 0
      %p222 = por %p220, %p221
      %p223 = scmp.ne.s32.totalorder %s211, %s212
      %p224 = scmp.eq.s32.totalorder %s30, 3
      %p225 = por %p223, %p224
      %p227 = scmp.ne.s32.totalorder %s212, %s226
      %p228 = scmp.eq.s32.totalorder %s30, 0
      %p229 = por %p227, %p228
      %p230 = scmp.le.s32.totalorder 1, %s24
      %p231 = scmp.lt.s32.totalorder %s24, 5
      %p232 = pnand %p230, %p231
      %p233 = pneg %p232
      // Predicated region
      $region9: #{tpu_custom_call.1} parent=5 // pred_check
        _
      $region10: #{tpu_custom_call.1} parent=5 // pred_check_branch
        %235 = sbr.rel (%p232) target = $region12
      $region11: #{tpu_custom_call.1} parent=5 // pred_region
        %s236 = ssub.s32 %s24, 1
        // Predicated region
        $region13: #{tpu_custom_call.1} parent=11 // pred_check
          %p237 = pneg %p45
        $region14: #{tpu_custom_call.1} parent=11 // pred_check_branch
          %239 = sbr.rel (%p237) target = $region16
        $region15: #{tpu_custom_call.1} parent=11 // pred_region
          %241 = vsyncadd [#allocation4], 0
          %s243 = sshll.u32 %s0, 4
          %s244 = int_to_ptr.hbm [resolvable:$true] %s243
          %s245 = sshll.u32 [#allocation3], 4
          %s246 = int_to_ptr.vmem [resolvable:$true] %s245
          %248 = dma.hbm_to_vmem [thread:$0]  %s244, 128, %s246, [#allocation4]
        $region16: #{tpu_custom_call.1} parent=11 // pred_fallthru
          _
      $region12: #{tpu_custom_call.1} parent=5 // pred_fallthru
        _
      %p249 = scmp.lt.s32.totalorder %s24, 4
      // Predicated region
      $region17: #{tpu_custom_call.1} parent=5 // pred_check
        %p250 = pneg %p249
      $region18: #{tpu_custom_call.1} parent=5 // pred_check_branch
        %252 = sbr.rel (%p250) target = $region20
      $region19: #{tpu_custom_call.1} parent=5 // pred_region
        // Predicated region
        $region21: #{tpu_custom_call.1} parent=19 // pred_check
          %p253 = pneg %p65
        $region22: #{tpu_custom_call.1} parent=19 // pred_check_branch
          %255 = sbr.rel (%p253) target = $region24
        $region23: #{tpu_custom_call.1} parent=19 // pred_region
          %s256 = sand.u32 %s24, 1
          %s257 = scalar_lea.sflag [#allocation7], %s256
          %s258 = sand.u32 %s55, 1
          %s259 = smul.addr %s258, 64
          %s260 = scalar_lea.vmem [#allocation6], %s259
          %262 = vsyncadd %s257, 0
          %s263 = smul.addr %s24, 16
          %s264 = smul.addr %s263, 4
          %s265 = scalar_lea.hbm %s1, %s264
          %s266 = sshll.u32 %s265, 4
          %s267 = int_to_ptr.hbm [resolvable:$true] %s266
          %s268 = sshll.u32 %s260, 4
          %s269 = int_to_ptr.vmem [resolvable:$true] %s268
          %274 = dma.hbm_to_vmem [thread:$0]  %s267, 1024, %s269, %s257, 64, 64, 4
        $region24: #{tpu_custom_call.1} parent=19 // pred_fallthru
          _
        // Predicated region
        $region25: #{tpu_custom_call.1} parent=19 // pred_check
          %p275 = pneg %p91
        $region26: #{tpu_custom_call.1} parent=19 // pred_check_branch
          %277 = sbr.rel (%p275) target = $region28
        $region27: #{tpu_custom_call.1} parent=19 // pred_region
          %s278 = sand.u32 %s24, 1
          %s279 = scalar_lea.sflag [#allocation7], %s278
          %s280 = sand.u32 %s81, 1
          %s281 = scalar_lea.vmem [#allocation8], %s280
          %283 = vsyncadd %s279, 0
          %s284 = scalar_lea.hbm %s2, %s24
          %s286 = sshll.u32 %s284, 4
          %s287 = int_to_ptr.hbm [resolvable:$true] %s286
          %s288 = sshll.u32 %s281, 4
          %s289 = int_to_ptr.vmem [resolvable:$true] %s288
          %291 = dma.hbm_to_vmem [thread:$0]  %s287, 16, %s289, %s279
        $region28: #{tpu_custom_call.1} parent=19 // pred_fallthru
          _
        // Predicated region
        $region29: #{tpu_custom_call.1} parent=19 // pred_check
          %p292 = pneg %p117
        $region30: #{tpu_custom_call.1} parent=19 // pred_check_branch
          %294 = sbr.rel (%p292) target = $region32
        $region31: #{tpu_custom_call.1} parent=19 // pred_region
          %s295 = sand.u32 %s24, 1
          %s296 = scalar_lea.sflag [#allocation10], %s295
          %s297 = sand.u32 %s107, 1
          %s298 = scalar_lea.vmem [#allocation9], %s297
          %300 = vsyncadd %s296, 0
          %s301 = scalar_lea.hbm %s3, %s24
          %s303 = sshll.u32 %s301, 4
          %s304 = int_to_ptr.hbm [resolvable:$true] %s303
          %s305 = sshll.u32 %s298, 4
          %s306 = int_to_ptr.vmem [resolvable:$true] %s305
          %308 = dma.hbm_to_vmem [thread:$0]  %s304, 16, %s306, %s296
        $region32: #{tpu_custom_call.1} parent=19 // pred_fallthru
          _
        // Predicated region
        $region33: #{tpu_custom_call.1} parent=19 // pred_check
          %p309 = pneg %p143
        $region34: #{tpu_custom_call.1} parent=19 // pred_check_branch
          %311 = sbr.rel (%p309) target = $region36
        $region35: #{tpu_custom_call.1} parent=19 // pred_region
          %s312 = sand.u32 %s24, 1
          %s313 = scalar_lea.sflag [#allocation10], %s312
          %s314 = sand.u32 %s133, 1
          %s315 = smul.addr %s314, 64
          %s316 = scalar_lea.vmem [#allocation11], %s315
          %318 = vsyncadd %s313, 0
          %s319 = smul.addr %s24, 16
          %s320 = smul.addr %s319, 4
          %s321 = scalar_lea.hbm %s4, %s320
          %s322 = sshll.u32 %s321, 4
          %s323 = int_to_ptr.hbm [resolvable:$true] %s322
          %s324 = sshll.u32 %s316, 4
          %s325 = int_to_ptr.vmem [resolvable:$true] %s324
          %330 = dma.hbm_to_vmem [thread:$0]  %s323, 1024, %s325, %s313, 64, 64, 4
        $region36: #{tpu_custom_call.1} parent=19 // pred_fallthru
          _
        // Predicated region
        $region37: #{tpu_custom_call.1} parent=19 // pred_check
          %p331 = pneg %p169
        $region38: #{tpu_custom_call.1} parent=19 // pred_check_branch
          %333 = sbr.rel (%p331) target = $region40
        $region39: #{tpu_custom_call.1} parent=19 // pred_region
          %p334 = scmp.lt.s32.totalorder %s24, 3
          %s335 = scalar_select %p334, %s24, 3
          %s336 = scalar_lea.vmem %s5, %s335
        $region40: #{tpu_custom_call.1} parent=19 // pred_fallthru
          _
        // Predicated region
        $region41: #{tpu_custom_call.1} parent=19 // pred_check
          %p337 = pneg %p195
        $region42: #{tpu_custom_call.1} parent=19 // pred_check_branch
          %339 = sbr.rel (%p337) target = $region44
        $region43: #{tpu_custom_call.1} parent=19 // pred_region
          %s340 = sand.u32 %s185, 1
          %s341 = scalar_lea.sflag [#allocation13], %s340
          %s342 = sand.u32 %s185, 1
          %s343 = scalar_lea.vmem [#allocation12], %s342
          %345 = vsyncadd %s341, 0
          %s346 = scalar_lea.hbm %s6, %s24
          %s348 = sshll.u32 %s346, 4
          %s349 = int_to_ptr.hbm [resolvable:$true] %s348
          %s350 = sshll.u32 %s343, 4
          %s351 = int_to_ptr.vmem [resolvable:$true] %s350
          %353 = dma.hbm_to_vmem [thread:$0]  %s349, 16, %s351, %s341
        $region44: #{tpu_custom_call.1} parent=19 // pred_fallthru
          _
      $region20: #{tpu_custom_call.1} parent=5 // pred_fallthru
        _
      %p354 = scmp.le.s32.totalorder 1, %s24
      %p355 = scmp.lt.s32.totalorder %s24, 5
      %p356 = pnand %p354, %p355
      %p357 = pneg %p356
      // Predicated region
      $region45: #{tpu_custom_call.1} parent=5 // pred_check
        _
      $region46: #{tpu_custom_call.1} parent=5 // pred_check_branch
        %359 = sbr.rel (%p356) target = $region48
      $region47: #{tpu_custom_call.1} parent=5 // pred_region
        %s360 = ssub.s32 %s24, 1
        // Predicated region
        $region49: #{tpu_custom_call.1} parent=47 // pred_check
          %p361 = pneg %p45
        $region50: #{tpu_custom_call.1} parent=47 // pred_check_branch
          %363 = sbr.rel (%p361) target = $region52
        $region51: #{tpu_custom_call.1} parent=47 // pred_region
          %365 = dma.done [#allocation4], 128
        $region52: #{tpu_custom_call.1} parent=47 // pred_fallthru
          _
        %s366 = sand.u32 %s29, 1
        %s367 = scalar_lea.sflag [#allocation7], %s366
        %s368 = sand.u32 %s58, 1
        %s369 = smul.addr %s368, 64
        %s370 = scalar_lea.vmem [#allocation6], %s369
        // Predicated region
        $region53: #{tpu_custom_call.1} parent=47 // pred_check
          %p371 = pneg %p71
        $region54: #{tpu_custom_call.1} parent=47 // pred_check_branch
          %373 = sbr.rel (%p371) target = $region56
        $region55: #{tpu_custom_call.1} parent=47 // pred_region
          %375 = dma.done %s367, 1024
        $region56: #{tpu_custom_call.1} parent=47 // pred_fallthru
          _
        %s376 = sand.u32 %s29, 1
        %s377 = scalar_lea.sflag [#allocation7], %s376
        %s378 = sand.u32 %s84, 1
        %s379 = scalar_lea.vmem [#allocation8], %s378
        // Predicated region
        $region57: #{tpu_custom_call.1} parent=47 // pred_check
          %p380 = pneg %p97
        $region58: #{tpu_custom_call.1} parent=47 // pred_check_branch
          %382 = sbr.rel (%p380) target = $region60
        $region59: #{tpu_custom_call.1} parent=47 // pred_region
          %384 = dma.done %s377, 16
        $region60: #{tpu_custom_call.1} parent=47 // pred_fallthru
          _
        %s385 = sand.u32 %s29, 1
        %s386 = scalar_lea.sflag [#allocation10], %s385
        %s387 = sand.u32 %s110, 1
        %s388 = scalar_lea.vmem [#allocation9], %s387
        // Predicated region
        $region61: #{tpu_custom_call.1} parent=47 // pred_check
          %p389 = pneg %p123
        $region62: #{tpu_custom_call.1} parent=47 // pred_check_branch
          %391 = sbr.rel (%p389) target = $region64
        $region63: #{tpu_custom_call.1} parent=47 // pred_region
          %393 = dma.done %s386, 16
        $region64: #{tpu_custom_call.1} parent=47 // pred_fallthru
          _
        %s394 = sand.u32 %s29, 1
        %s395 = scalar_lea.sflag [#allocation10], %s394
        %s396 = sand.u32 %s136, 1
        %s397 = smul.addr %s396, 64
        %s398 = scalar_lea.vmem [#allocation11], %s397
        // Predicated region
        $region65: #{tpu_custom_call.1} parent=47 // pred_check
          %p399 = pneg %p149
        $region66: #{tpu_custom_call.1} parent=47 // pred_check_branch
          %401 = sbr.rel (%p399) target = $region68
        $region67: #{tpu_custom_call.1} parent=47 // pred_region
          %403 = dma.done %s395, 1024
        $region68: #{tpu_custom_call.1} parent=47 // pred_fallthru
          _
        %s404 = sand.u32 %s188, 1
        %s405 = scalar_lea.sflag [#allocation13], %s404
        %s406 = sand.u32 %s188, 1
        %s407 = scalar_lea.vmem [#allocation12], %s406
        // Predicated region
        $region69: #{tpu_custom_call.1} parent=47 // pred_check
          %p408 = pneg %p201
        $region70: #{tpu_custom_call.1} parent=47 // pred_check_branch
          %410 = sbr.rel (%p408) target = $region72
        $region71: #{tpu_custom_call.1} parent=47 // pred_region
          %412 = dma.done %s405, 16
        $region72: #{tpu_custom_call.1} parent=47 // pred_fallthru
          _
        %p413 = pneg %p45
        %p414 = pneg %p42
        %s415 = sand.u32 %s29, 1
        %s416 = scalar_lea.sflag [#allocation7], %s415
        %s417 = sand.u32 %s58, 1
        %s418 = smul.addr %s417, 64
        %s419 = scalar_lea.vmem [#allocation6], %s418
        %p420 = pneg %p71
        %p421 = pneg %p68
        %s422 = sand.u32 %s29, 1
        %s423 = scalar_lea.sflag [#allocation7], %s422
        %s424 = sand.u32 %s84, 1
        %s425 = scalar_lea.vmem [#allocation8], %s424
        %p426 = pneg %p97
        %p427 = pneg %p94
        %s428 = sand.u32 %s29, 1
        %s429 = scalar_lea.sflag [#allocation10], %s428
        %s430 = sand.u32 %s110, 1
        %s431 = scalar_lea.vmem [#allocation9], %s430
        %p432 = pneg %p123
        %p433 = pneg %p120
        %s434 = sand.u32 %s29, 1
        %s435 = scalar_lea.sflag [#allocation10], %s434
        %s436 = sand.u32 %s136, 1
        %s437 = smul.addr %s436, 64
        %s438 = scalar_lea.vmem [#allocation11], %s437
        %p439 = pneg %p149
        %p440 = pneg %p146
        %p441 = scmp.lt.s32.totalorder %s29, 3
        %s442 = scalar_select %p441, %s29, 3
        %s443 = scalar_lea.vmem %s5, %s442
        %p444 = pneg %p175
        %p445 = pneg %p172
        %s446 = sand.u32 %s188, 1
        %s447 = scalar_lea.sflag [#allocation13], %s446
        %s448 = sand.u32 %s188, 1
        %s449 = scalar_lea.vmem [#allocation12], %s448
        %p450 = pneg %p201
        %p451 = pneg %p198
        %p452 = pneg %p222
        %p453 = pneg %p219
        %p454 = scmp.lt.s32.totalorder %s29, 3
        %s455 = scalar_select %p454, %s29, 3
        %s456 = scalar_lea.vmem %s5, %s455
        %p457 = scmp.eq.s32.totalorder %s29, 0
        // Predicated region
        $region73: #{tpu_custom_call.1} parent=47 // pred_check
          %p458 = pneg %p457
        $region74: #{tpu_custom_call.1} parent=47 // pred_check_branch
          %460 = sbr.rel (%p458) target = $region76
        $region75: #{tpu_custom_call.1} parent=47 // pred_region
          %v461 = vld [vmem:[#allocation3] sm:$0xff]
          %462 = vst [vmem:[#allocation2] sm:$0xff] %v461
        $region76: #{tpu_custom_call.1} parent=47 // pred_fallthru
          _
        %v463 = vld [vmem:[#allocation2] sm:$0xff]
        %v464 = vpack.c.bf16 %v463, %v463
        %v465 = vld [vmem:[%s370] sm:$0xf]
        %v466 = vld [vmem:[%s370 + $0x4] sm:$0xf]
        %v467 = vld [vmem:[%s370 + $0x8] sm:$0xf]
        %v468 = vld [vmem:[%s370 + $0xc] sm:$0xf]
        %v469 = vld [vmem:[%s370 + $0x10] sm:$0xf]
        %v470 = vld [vmem:[%s370 + $0x14] sm:$0xf]
        %v471 = vld [vmem:[%s370 + $0x18] sm:$0xf]
        %v472 = vld [vmem:[%s370 + $0x1c] sm:$0xf]
        %v473 = vld [vmem:[%s370 + $0x20] sm:$0xf]
        %v474 = vld [vmem:[%s370 + $0x24] sm:$0xf]
        %v475 = vld [vmem:[%s370 + $0x28] sm:$0xf]
        %v476 = vld [vmem:[%s370 + $0x2c] sm:$0xf]
        %v477 = vld [vmem:[%s370 + $0x30] sm:$0xf]
        %v478 = vld [vmem:[%s370 + $0x34] sm:$0xf]
        %v479 = vld [vmem:[%s370 + $0x38] sm:$0xf]
        %v480 = vld [vmem:[%s370 + $0x3c] sm:$0xf]
        %v497 = vunpack.c.l.b16 %v465
        %v498 = vunpack.c.l.b16 %v466
        %v499 = vunpack.c.l.b16 %v467
        %v500 = vunpack.c.l.b16 %v468
        %v501 = vunpack.c.l.b16 %v469
        %v502 = vunpack.c.l.b16 %v470
        %v503 = vunpack.c.l.b16 %v471
        %v504 = vunpack.c.l.b16 %v472
        %v505 = vunpack.c.l.b16 %v473
        %v506 = vunpack.c.l.b16 %v474
        %v507 = vunpack.c.l.b16 %v475
        %v508 = vunpack.c.l.b16 %v476
        %v509 = vunpack.c.l.b16 %v477
        %v510 = vunpack.c.l.b16 %v478
        %v511 = vunpack.c.l.b16 %v479
        %v512 = vunpack.c.l.b16 %v480
        %v513 = vpack.c.b16 %v498, %v497
        %v514 = vpack.c.b16 %v500, %v499
        %v515 = vpack.c.b16 %v502, %v501
        %v516 = vpack.c.b16 %v504, %v503
        %v517 = vpack.c.b16 %v506, %v505
        %v518 = vpack.c.b16 %v508, %v507
        %v519 = vpack.c.b16 %v510, %v509
        %v520 = vpack.c.b16 %v512, %v511
        %529 = vmatpush.bf16.msra.mxu0 %v520
        %530 = vmatpush.bf16.msra.mxu0 %v519
        %531 = vmatpush.bf16.msra.mxu0 %v518
        %532 = vmatpush.bf16.msra.mxu0 %v517
        %533 = vmatpush.bf16.msra.mxu0 %v516
        %534 = vmatpush.bf16.msra.mxu0 %v515
        %535 = vmatpush.bf16.msra.mxu0 %v514
        %536 = vmatpush.bf16.msra.mxu0 %v513
        %537 = vmatmul.bf16.gmra.mxu0 %v464
        %v538 = vpop.f32.mrf.mxu0
        %v539 = vadd.f32 0.0, %v538
        %v540 = vpop.f32.mrf.mxu0
        %541 = vdwg.mxu0
        %v542 = vrot.slane %v539, 4
        %v543 = vadd.f32 %v539, %v542
        %v544 = vrot.slane %v543, 2
        %v545 = vadd.f32 %v543, %v544
        %v546 = vrot.slane %v545, 1
        %v547 = vadd.f32 %v545, %v546
        %v548 = vrcp.pop 8.0
        %v549 = vmul.f32 8.0, %v548
        %v550 = vsub.f32 1.0, %v549
        %v551 = vmul.f32 %v548, %v550
        %v552 = vadd.f32 %v548, %v551
        %vm553 = vweird.f32 %v548
        %v554 = vsel %vm553, %v548, %v552
        %v555 = vmul.f32 %v547, %v554
        %v556 = vsub.f32 %v539, %v555
        %v557 = vmul.f32 %v556, %v556
        %v558 = vrot.slane %v557, 4
        %v559 = vadd.f32 %v557, %v558
        %v560 = vrot.slane %v559, 2
        %v561 = vadd.f32 %v559, %v560
        %v562 = vrot.slane %v561, 1
        %v563 = vadd.f32 %v561, %v562
        %v564 = vmul.f32 %v563, %v554
        %v565 = vld [vmem:[%s379] sm:$0x1]
        %v566 = vadd.f32 %v564, 1e-05
        %v567 = vrsqrt.pop %v566
        %v568 = vmul.f32 %v567, %v566
        %v569 = vmul.f32 %v568, %v567
        %v570 = vmul.f32 0.5, %v569
        %v571 = vsub.f32 1.5, %v570
        %v572 = vmul.f32 %v567, %v571
        %vm573 = vweird.f32 %v566
        %vm574 = vweird.f32 %v567
        %vm575 = vmor %vm573, %vm574
        %v576 = vsel %vm575, %v567, %v572
        %v577 = vmul.f32 %v565, %v576
        %v579 = vperm.slane %v577, 0
        %v581 = vmul.f32 %v556, %v579
        %v582 = vld [vmem:[%s388] sm:$0x1]
        %v584 = vperm.slane %v582, 0
        %v586 = vadd.f32 %v581, %v584
        %v587 = vmul.f32 %v586, 0.01
        %v588 = vmax.f32 %v586, %v587
        %v589 = vpack.c.bf16 %v588, %v588
        %v590 = vld [vmem:[%s398] sm:$0xf]
        %v591 = vld [vmem:[%s398 + $0x4] sm:$0xf]
        %v592 = vld [vmem:[%s398 + $0x8] sm:$0xf]
        %v593 = vld [vmem:[%s398 + $0xc] sm:$0xf]
        %v594 = vld [vmem:[%s398 + $0x10] sm:$0xf]
        %v595 = vld [vmem:[%s398 + $0x14] sm:$0xf]
        %v596 = vld [vmem:[%s398 + $0x18] sm:$0xf]
        %v597 = vld [vmem:[%s398 + $0x1c] sm:$0xf]
        %v598 = vld [vmem:[%s398 + $0x20] sm:$0xf]
        %v599 = vld [vmem:[%s398 + $0x24] sm:$0xf]
        %v600 = vld [vmem:[%s398 + $0x28] sm:$0xf]
        %v601 = vld [vmem:[%s398 + $0x2c] sm:$0xf]
        %v602 = vld [vmem:[%s398 + $0x30] sm:$0xf]
        %v603 = vld [vmem:[%s398 + $0x34] sm:$0xf]
        %v604 = vld [vmem:[%s398 + $0x38] sm:$0xf]
        %v605 = vld [vmem:[%s398 + $0x3c] sm:$0xf]
        %v622 = vunpack.c.l.b16 %v590
        %v623 = vunpack.c.l.b16 %v591
        %v624 = vunpack.c.l.b16 %v592
        %v625 = vunpack.c.l.b16 %v593
        %v626 = vunpack.c.l.b16 %v594
        %v627 = vunpack.c.l.b16 %v595
        %v628 = vunpack.c.l.b16 %v596
        %v629 = vunpack.c.l.b16 %v597
        %v630 = vunpack.c.l.b16 %v598
        %v631 = vunpack.c.l.b16 %v599
        %v632 = vunpack.c.l.b16 %v600
        %v633 = vunpack.c.l.b16 %v601
        %v634 = vunpack.c.l.b16 %v602
        %v635 = vunpack.c.l.b16 %v603
        %v636 = vunpack.c.l.b16 %v604
        %v637 = vunpack.c.l.b16 %v605
        %v638 = vpack.c.b16 %v623, %v622
        %v639 = vpack.c.b16 %v625, %v624
        %v640 = vpack.c.b16 %v627, %v626
        %v641 = vpack.c.b16 %v629, %v628
        %v642 = vpack.c.b16 %v631, %v630
        %v643 = vpack.c.b16 %v633, %v632
        %v644 = vpack.c.b16 %v635, %v634
        %v645 = vpack.c.b16 %v637, %v636
        %654 = vmatpush.bf16.msra.mxu0 %v645
        %655 = vmatpush.bf16.msra.mxu0 %v644
        %656 = vmatpush.bf16.msra.mxu0 %v643
        %657 = vmatpush.bf16.msra.mxu0 %v642
        %658 = vmatpush.bf16.msra.mxu0 %v641
        %659 = vmatpush.bf16.msra.mxu0 %v640
        %660 = vmatpush.bf16.msra.mxu0 %v639
        %661 = vmatpush.bf16.msra.mxu0 %v638
        %662 = vmatmul.bf16.gmra.mxu0 %v589
        %v663 = vpop.f32.mrf.mxu0
        %v664 = vadd.f32 0.0, %v663
        %v665 = vpop.f32.mrf.mxu0
        %666 = vdwg.mxu0
        %v667 = vrot.slane %v664, 4
        %v668 = vadd.f32 %v664, %v667
        %v669 = vrot.slane %v668, 2
        %v670 = vadd.f32 %v668, %v669
        %v671 = vrot.slane %v670, 1
        %v672 = vadd.f32 %v670, %v671
        %v673 = vmul.f32 %v672, %v554
        %v674 = vsub.f32 %v664, %v673
        %v675 = vmul.f32 %v674, %v674
        %v676 = vrot.slane %v675, 4
        %v677 = vadd.f32 %v675, %v676
        %v678 = vrot.slane %v677, 2
        %v679 = vadd.f32 %v677, %v678
        %v680 = vrot.slane %v679, 1
        %v681 = vadd.f32 %v679, %v680
        %v682 = vmul.f32 %v681, %v554
        %v683 = vld [vmem:[%s456] sm:$0x1]
        %v684 = vadd.f32 %v682, 1e-05
        %v685 = vrsqrt.pop %v684
        %v686 = vmul.f32 %v685, %v684
        %v687 = vmul.f32 %v686, %v685
        %v688 = vmul.f32 0.5, %v687
        %v689 = vsub.f32 1.5, %v688
        %v690 = vmul.f32 %v685, %v689
        %vm691 = vweird.f32 %v684
        %vm692 = vweird.f32 %v685
        %vm693 = vmor %vm691, %vm692
        %v694 = vsel %vm693, %v685, %v690
        %v695 = vmul.f32 %v683, %v694
        %v697 = vperm.slane %v695, 0
        %v699 = vmul.f32 %v674, %v697
        %v700 = vld [vmem:[%s407] sm:$0x1]
        %v702 = vperm.slane %v700, 0
        %v704 = vadd.f32 %v699, %v702
        %v705 = vadd.f32 %v704, %v463
        %v706 = vmul.f32 %v705, 0.01
        %v707 = vmax.f32 %v705, %v706
        %708 = vst [vmem:[#allocation2] sm:$0xff] %v707
        %p709 = scmp.eq.s32.totalorder %s29, 3
        // Predicated region
        $region77: #{tpu_custom_call.1} parent=47 // pred_check
          %p710 = pneg %p709
        $region78: #{tpu_custom_call.1} parent=47 // pred_check_branch
          %712 = sbr.rel (%p710) target = $region80
        $region79: #{tpu_custom_call.1} parent=47 // pred_region
          %713 = vst [vmem:[#allocation14] sm:$0xff] %v707
        $region80: #{tpu_custom_call.1} parent=47 // pred_fallthru
          _
        // Predicated region
        $region81: #{tpu_custom_call.1} parent=47 // pred_check
          %p714 = pneg %p219
        $region82: #{tpu_custom_call.1} parent=47 // pred_check_branch
          %716 = sbr.rel (%p714) target = $region84
        $region83: #{tpu_custom_call.1} parent=47 // pred_region
          %718 = vsyncadd [#allocation5], 0
          %s720 = sshll.u32 [#allocation14], 4
          %s721 = int_to_ptr.vmem [resolvable:$true] %s720
          %s722 = sshll.u32 %s7, 4
          %s723 = int_to_ptr.hbm [resolvable:$true] %s722
          %725 = dma.vmem_to_hbm [thread:$0]  %s721, 128, %s723, [#allocation5]
        $region84: #{tpu_custom_call.1} parent=47 // pred_fallthru
          _
        // Predicated region
        $region85: #{tpu_custom_call.1} parent=47 // pred_check
          %p726 = pneg %p219
        $region86: #{tpu_custom_call.1} parent=47 // pred_check_branch
          %728 = sbr.rel (%p726) target = $region88
        $region87: #{tpu_custom_call.1} parent=47 // pred_region
          %730 = dma.done [#allocation5], 128
        $region88: #{tpu_custom_call.1} parent=47 // pred_fallthru
          _
      $region48: #{tpu_custom_call.1} parent=5 // pred_fallthru
        _
      %p731 = scmp.le.s32.totalorder 2, %s24
      // Predicated region
      $region89: #{tpu_custom_call.1} parent=5 // pred_check
        %p732 = pneg %p731
      $region90: #{tpu_custom_call.1} parent=5 // pred_check_branch
        %734 = sbr.rel (%p732) target = $region92
      $region91: #{tpu_custom_call.1} parent=5 // pred_region
        %s735 = ssub.s32 %s24, 2
      $region92: #{tpu_custom_call.1} parent=5 // pred_fallthru
        _
    $region6: #{tpu_custom_call.1} parent=1 // loop_footer
      %s28 = sadd.s32 1, %s24
    $region7: #{tpu_custom_call.1} parent=1 // loop_footer_branch
      %23 = sbr.rel target = $region3
    $region8: #{tpu_custom_call.1} parent=1 // loop_exit
      _
    %736 = vsyncpa [#allocation4], 1
    %s737 = scalar_lea.sflag [#allocation4], 1
    %738 = vsyncpa %s737, 1
    %739 = vsyncpa [#allocation7], 1
    %s740 = scalar_lea.sflag [#allocation7], 1
    %741 = vsyncpa %s740, 1
    %742 = vsyncpa [#allocation10], 1
    %s743 = scalar_lea.sflag [#allocation10], 1
    %744 = vsyncpa %s743, 1
    %745 = vsyncpa [#allocation13], 1
    %s746 = scalar_lea.sflag [#allocation13], 1
    %747 = vsyncpa %s746, 1
    %748 = vsyncpa [#allocation5], 1
    %s749 = scalar_lea.sflag [#allocation5], 1
    %750 = vsyncpa %s749, 1

</llo_original>
